<compile_context>
chip_gen: v6e
topology: v6e:2x2x1
jax: 0.10.0
libtpu: 0.0.40
codegen_flags: <defaults>
</compile_context>

<pallas_src>
import math
import functools

import jax
import jax.numpy as jnp
from jax.experimental import pallas as pl
from jax.experimental.pallas import tpu as pltpu


# ----------------------------------------------------------------------------
# helpers
# ----------------------------------------------------------------------------

def _round_up(x, m):
    return ((x + m - 1) // m) * m


def _cdiv(a, b):
    return -(-a // b)


def _pad2d(a, rows, cols, dtype=None):
    if dtype is not None and a.dtype != dtype:
        a = a.astype(dtype)
    r, c = a.shape
    if r == rows and c == cols:
        return a
    return jnp.pad(a, ((0, rows - r), (0, cols - c)))


def _vmem_capacity_bytes():
    """Physical VMEM per TensorCore; conservative (v7x-safe) fallback."""
    try:
        return int(pltpu.get_tpu_info().vmem_capacity_bytes)
    except Exception:
        return 64 * 1024 * 1024


def _tensorcores_per_chip():
    """2 TensorCores on v7x / megacore parts, else 1 (misdetection = perf only)."""
    try:
        kind = jax.devices()[0].device_kind.lower()
    except Exception:
        return 1
    if ("v7" in kind) or ("7x" in kind) or ("v4" in kind) or ("v5p" in kind):
        return 2
    return 1


_VMEM_CAP = _vmem_capacity_bytes()
# Scoped limit handed to Mosaic: ~3/4 of physical, capped at 100 MiB
#   -> ~96-100 MiB on v5e/v6e (128 MiB physical), ~48 MiB on v7x (64 MiB).
_VMEM_LIMIT = int(min((_VMEM_CAP * 3) // 4, 100 * 1024 * 1024))
# Gate for the fused single-launch path (headroom for compiler scratch).
_FUSED_VMEM_BUDGET = (_VMEM_LIMIT * 17) // 20

_COMPUTE_DTYPE = jnp.bfloat16   # MXU operand dtype; accumulation stays f32
_COMPUTE_ITEMSIZE = 2           # bytes per bf16 element


def _fused_plan(n, fin, fout, cores):
    """Pick fused-path tiling / core split and estimate VMEM footprint (bytes)."""
    fout_p = _round_up(fout, 128)              # lane-dense output columns
    r0 = max(1, _cdiv(n, 256))                 # row blocks of at most ~256 rows
    splits = cores if (cores > 1 and r0 >= cores) else 1
    r = splits * _cdiv(r0, splits)             # total row blocks (multiple of splits)
    tm = _round_up(_cdiv(n, r), 8)             # minimal-padding block height
    n_pad = r * tm
    blocks_per_split = r // splits

    itm = _COMPUTE_ITEMSIZE
    out_itm = 4                                # output kept in the input dtype (f32)
    bytes_est = (
        2 * n_pad * fin * itm                  # x (resident; double-buffered by default)
        + 2 * fin * fout_p * itm               # weight (resident)
        + 2 * tm * n_pad * itm                 # adj row block (double-buffered stream)
        + 2 * tm * fout_p * out_itm            # output row block
        + n_pad * fout_p * itm                 # support scratch (bf16, single copy)
        + 2 * fout_p * 4                       # bias row
    )
    return tm, splits, blocks_per_split, n_pad, fout_p, bytes_est


# ----------------------------------------------------------------------------
# fused kernel:  out_rowblock = adj_rowblock @ (x @ W) + bias
# ----------------------------------------------------------------------------

def _gcn_fused_kernel(*refs, has_bias):
    if has_bias:
        x_ref, w_ref, adj_ref, bias_ref, o_ref, support_ref = refs
    else:
        x_ref, w_ref, adj_ref, o_ref, support_ref = refs
        bias_ref = None

    # support = x @ W (f32 accumulate, stored bf16).  Each core-split runs its
    # own sequential row-block axis, so program_id(1) == 0 happens exactly once
    # per core and the scratch is never read uninitialized.
    @pl.when(pl.program_id(1) == 0)
    def _():
        support_ref[...] = jnp.dot(
            x_ref[...], w_ref[...], preferred_element_type=jnp.float32
        ).astype(support_ref.dtype)

    acc = jnp.dot(
        adj_ref[...], support_ref[...], preferred_element_type=jnp.float32
    )
    if has_bias:
        acc = acc + bias_ref[...].astype(jnp.float32)
    o_ref[...] = acc.astype(o_ref.dtype)


def graph_convolution_fused(x, adj, weight, bias=None):
    n, fin = x.shape
    fout = weight.shape[1]
    cores = _tensorcores_per_chip()
    tm, splits, bps, n_pad, fout_p, _ = _fused_plan(n, fin, fout, cores)

    x_p = _pad2d(x, n_pad, fin, _COMPUTE_DTYPE)
    w_p = _pad2d(weight, fin, fout_p, _COMPUTE_DTYPE)
    adj_p = _pad2d(adj, n_pad, n_pad, _COMPUTE_DTYPE)

    in_specs = [
        pl.BlockSpec((n_pad, fin), lambda c, j: (0, 0)),            # x : resident
        pl.BlockSpec((fin, fout_p), lambda c, j: (0, 0)),           # W : resident
        pl.BlockSpec((tm, n_pad), lambda c, j: (c * bps + j, 0)),   # adj row block
    ]
    operands = [x_p, w_p, adj_p]

    has_bias = bias is not None
    if has_bias:
        bias_p = _pad2d(bias.reshape(1, fout).astype(jnp.float32), 1, fout_p)
        in_specs.append(pl.BlockSpec((1, fout_p), lambda c, j: (0, 0)))
        operands.append(bias_p)

    out = pl.pallas_call(
        functools.partial(_gcn_fused_kernel, has_bias=has_bias),
        out_shape=jax.ShapeDtypeStruct((n_pad, fout_p), x.dtype),
        grid_spec=pltpu.PrefetchScalarGridSpec(
            num_scalar_prefetch=0,
            grid=(splits, bps),
            in_specs=in_specs,
            out_specs=pl.BlockSpec((tm, fout_p), lambda c, j: (c * bps + j, 0)),
            scratch_shapes=[pltpu.VMEM((n_pad, fout_p), _COMPUTE_DTYPE)],
        ),
        compiler_params=pltpu.CompilerParams(
            # Leading axis may be sharded across TensorCores (v7x); the
            # row-block axis must run sequentially so the per-core support
            # scratch is filled before it is read.
            dimension_semantics=("parallel", "arbitrary"),
            vmem_limit_bytes=_VMEM_LIMIT,
        ),
    )(*operands)
    return out[:n, :fout]


# ----------------------------------------------------------------------------
# tiled fallback (large graphs): bf16 matmuls, f32 scratch accumulator
# ----------------------------------------------------------------------------

def _mm_kernel(a_ref, b_ref, o_ref, acc_ref):
    k = pl.program_id(2)

    @pl.when(k == 0)
    def _():
        acc_ref[...] = jnp.zeros_like(acc_ref)

    acc_ref[...] += jnp.dot(a_ref[...], b_ref[...], preferred_element_type=jnp.float32)

    @pl.when(k == pl.num_programs(2) - 1)
    def _():
        o_ref[...] = acc_ref[...].astype(o_ref.dtype)


def _mm_bias_kernel(a_ref, b_ref, bias_ref, o_ref, acc_ref):
    k = pl.program_id(2)

    @pl.when(k == 0)
    def _():
        acc_ref[...] = jnp.zeros_like(acc_ref)

    acc_ref[...] += jnp.dot(a_ref[...], b_ref[...], preferred_element_type=jnp.float32)

    @pl.when(k == pl.num_programs(2) - 1)
    def _():
        o_ref[...] = (acc_ref[...] + bias_ref[...]).astype(o_ref.dtype)


def _pick_tile(dim, tile_max, align):
    """Largest tile <= tile_max that minimizes padding of `dim`."""
    blocks = max(1, _cdiv(dim, tile_max))
    return _round_up(_cdiv(dim, blocks), align)


def _matmul_tiled(a, b, bias_row=None, *, out_dtype=None, tm=512, tn=512, tk=1024):
    """a @ b (+ bias_row) with bf16 operands, f32 VMEM accumulator.

    Tile caps 512/512/1024: bf16 input blocks + f32 accumulator total < 8 MiB,
    which fits the generation-aware scoped VMEM limit on v5e/v6e/v7x while
    amortizing per-grid-step pipeline overhead.
    """
    M, K = a.shape
    K2, N = b.shape
    assert K == K2
    out_dtype = a.dtype if out_dtype is None else out_dtype

    tm = _pick_tile(M, tm, 8)
    tn = _pick_tile(N, tn, 128)    # lane-dense output stores
    tk = _pick_tile(K, tk, 128)
    Mp, Np, Kp = _round_up(M, tm), _round_up(N, tn), _round_up(K, tk)

    a_p = _pad2d(a, Mp, Kp, _COMPUTE_DTYPE)
    b_p = _pad2d(b, Kp, Np, _COMPUTE_DTYPE)

    in_specs = [
        pl.BlockSpec((tm, tk), lambda i, j, k: (i, k)),
        pl.BlockSpec((tk, tn), lambda i, j, k: (k, j)),
    ]
    operands = [a_p, b_p]
    if bias_row is not None:
        bias_p = _pad2d(bias_row.astype(jnp.float32), 1, Np)
        in_specs.append(pl.BlockSpec((1, tn), lambda i, j, k: (0, j)))
        operands.append(bias_p)
        kernel = _mm_bias_kernel
    else:
        kernel = _mm_kernel

    out = pl.pallas_call(
        kernel,
        out_shape=jax.ShapeDtypeStruct((Mp, Np), out_dtype),
        grid_spec=pltpu.PrefetchScalarGridSpec(
            num_scalar_prefetch=0,
            grid=(Mp // tm, Np // tn, Kp // tk),
            in_specs=in_specs,
            out_specs=pl.BlockSpec((tm, tn), lambda i, j, k: (i, j)),
            scratch_shapes=[pltpu.VMEM((tm, tn), jnp.float32)],
        ),
        compiler_params=pltpu.CompilerParams(
            dimension_semantics=("parallel", "parallel", "arbitrary"),
            vmem_limit_bytes=_VMEM_LIMIT,
        ),
    )(*operands)
    return out[:M, :N]


def graph_convolution_tiled(x, adj, weight, bias=None):
    # `support` stays bf16 end-to-end: halves its HBM writeback and re-read.
    support = _matmul_tiled(x, weight, None, out_dtype=_COMPUTE_DTYPE)
    bias_row = None if bias is None else bias.reshape(1, -1)
    return _matmul_tiled(adj, support, bias_row, out_dtype=x.dtype)


# ----------------------------------------------------------------------------
# public entry point: matches GraphConvolution.forward(input, adj)
# ----------------------------------------------------------------------------

def graph_convolution(x, adj, weight, bias=None):
    """output = adj @ (x @ weight) + bias  (dense adj, bf16 MXU / f32 accum)."""
    n, fin = x.shape
    fout = weight.shape[1]
    *_, est = _fused_plan(n, fin, fout, _tensorcores_per_chip())
    if est <= _FUSED_VMEM_BUDGET:
        return graph_convolution_fused(x, adj, weight, bias)
    return graph_convolution_tiled(x, adj, weight, bias)


def init_gcn_params(key, in_features, out_features, use_bias=True, dtype=jnp.float32):
    """Deterministic init matching reset_parameters(): U(-stdv, stdv)."""
    stdv = 1.0 / math.sqrt(out_features)
    kw, kb = jax.random.split(key)
    weight = jax.random.uniform(
        kw, (in_features, out_features), dtype=dtype, minval=-stdv, maxval=stdv
    )
    bias = (
        jax.random.uniform(kb, (out_features,), dtype=dtype, minval=-stdv, maxval=stdv)
        if use_bias
        else None
    )
    return weight, bias


if __name__ == "__main__":
    key = jax.random.PRNGKey(0)
    k_x, k_adj, k_p = jax.random.split(key, 3)

    n_nodes = 256       # number of graph nodes
    in_features = 64
    out_features = 32

    x = jax.random.normal(k_x, (n_nodes, in_features), dtype=jnp.float32)

    # Dense symmetric row-normalized adjacency (synthetic).
    a_raw = jax.random.uniform(k_adj, (n_nodes, n_nodes), dtype=jnp.float32)
    a_bin = (a_raw < 0.05).astype(jnp.float32)
    adj = a_bin + a_bin.T + jnp.eye(n_nodes, dtype=jnp.float32)
    adj = adj / jnp.sum(adj, axis=1, keepdims=True)

    weight, bias = init_gcn_params(k_p, in_features, out_features, use_bias=True)

    ref = adj @ (x @ weight) + bias[None, :]

    # Fused single-kernel path (default at these sizes).  bf16 MXU operands
    # with f32 accumulation -> compare against the f32 reference with a
    # slightly loosened tolerance.
    out = jax.block_until_ready(graph_convolution(x, adj, weight, bias))
    assert out.shape == (n_nodes, out_features)
    assert out.dtype == x.dtype
    assert jnp.allclose(out, ref, atol=5e-2, rtol=5e-2)

    # Bias-free variant (no zero-bias stream).
    out_nb = jax.block_until_ready(graph_convolution(x, adj, weight, None))
    assert jnp.allclose(out_nb, adj @ (x @ weight), atol=5e-2, rtol=5e-2)

    # Tiled fallback path (used for large graphs) — exercised here for coverage.
    out_tiled = jax.block_until_ready(graph_convolution_tiled(x, adj, weight, bias))
    assert out_tiled.shape == (n_nodes, out_features)
    assert jnp.allclose(out_tiled, ref, atol=5e-2, rtol=5e-2)

    print("KERNEL_OK")
</pallas_src>

<mosaic_0001>
module attributes {stable_mosaic.version = 11 : i64} {
  func.func @_gcn_fused_kernel(%arg0: i32, %arg1: i32, %arg2: memref<256x64xbf16, #tpu.memory_space<vmem>>, %arg3: memref<64x128xbf16, #tpu.memory_space<vmem>>, %arg4: memref<256x256xbf16, #tpu.memory_space<vmem>>, %arg5: memref<1x128xf32, #tpu.memory_space<vmem>>, %arg6: memref<256x128xf32, #tpu.memory_space<vmem>>, %arg7: memref<256x128xbf16, #tpu.memory_space<vmem>>) attributes {dimension_semantics = [#tpu.dimension_semantics<parallel>, #tpu.dimension_semantics<arbitrary>], iteration_bounds = array<i64: 1, 1>, scalar_prefetch = 0 : i64, scratch_operands = 1 : i64, tpu.core_type = #tpu.core_type<tc>, window_params = [{pipeline_mode = #tpu.pipeline_mode<synchronous>, transform_indices = @transform_0, window_bounds = array<i64: 256, 64>}, {pipeline_mode = #tpu.pipeline_mode<synchronous>, transform_indices = @transform_1, window_bounds = array<i64: 64, 128>}, {transform_indices = @transform_2, window_bounds = array<i64: 256, 256>}, {pipeline_mode = #tpu.pipeline_mode<synchronous>, transform_indices = @transform_3, window_bounds = array<i64: 1, 128>}, {transform_indices = @transform_4, window_bounds = array<i64: 256, 128>}]} {
    %c0_i32 = arith.constant 0 : i32
    %0 = arith.cmpi eq, %arg1, %c0_i32 : i32
    %1 = arith.extui %0 : i1 to i32
    %c0_i32_0 = arith.constant 0 : i32
    %2 = arith.cmpi ne, %1, %c0_i32_0 : i32
    scf.if %2 {
      %c0_8 = arith.constant 0 : index
      %c0_9 = arith.constant 0 : index
      %10 = vector.load %arg2[%c0_8, %c0_9] : memref<256x64xbf16, #tpu.memory_space<vmem>>, vector<256x64xbf16>
      %c0_10 = arith.constant 0 : index
      %c0_11 = arith.constant 0 : index
      %11 = vector.load %arg3[%c0_10, %c0_11] : memref<64x128xbf16, #tpu.memory_space<vmem>>, vector<64x128xbf16>
      %cst_12 = arith.constant dense<0.000000e+00> : vector<256x128xf32>
      %12 = tpu.matmul %10, %11, %cst_12 {dimension_numbers = #tpu.dot_dimension_numbers<[1], [0], [0], [1], [0, 0, 1, 1], [], []>} : vector<256x64xbf16>, vector<64x128xbf16>, vector<256x128xf32> -> vector<256x128xf32>
      %13 = arith.truncf %12 : vector<256x128xf32> to vector<256x128xbf16>
      %c0_13 = arith.constant 0 : index
      %c0_14 = arith.constant 0 : index
      %14 = vector.load %arg7[%c0_13, %c0_14] : memref<256x128xbf16, #tpu.memory_space<vmem>>, vector<256x128xbf16>
      tpu.vector_store %arg7[%c0_13, %c0_14], %13 {strides = array<i32>} : memref<256x128xbf16, #tpu.memory_space<vmem>>, vector<256x128xbf16>,
    } else {
    }
    %c0 = arith.constant 0 : index
    %c0_1 = arith.constant 0 : index
    %3 = vector.load %arg4[%c0, %c0_1] : memref<256x256xbf16, #tpu.memory_space<vmem>>, vector<256x256xbf16>
    %c0_2 = arith.constant 0 : index
    %c0_3 = arith.constant 0 : index
    %4 = vector.load %arg7[%c0_2, %c0_3] : memref<256x128xbf16, #tpu.memory_space<vmem>>, vector<256x128xbf16>
    %cst = arith.constant dense<0.000000e+00> : vector<256x128xf32>
    %5 = tpu.matmul %3, %4, %cst {dimension_numbers = #tpu.dot_dimension_numbers<[1], [0], [0], [1], [0, 0, 1, 1], [], []>} : vector<256x256xbf16>, vector<256x128xbf16>, vector<256x128xf32> -> vector<256x128xf32>
    %c0_4 = arith.constant 0 : index
    %c0_5 = arith.constant 0 : index
    %6 = vector.load %arg5[%c0_4, %c0_5] : memref<1x128xf32, #tpu.memory_space<vmem>>, vector<1x128xf32>
    %7 = vector.broadcast %6 : vector<1x128xf32> to vector<256x128xf32>
    %8 = arith.addf %5, %7 : vector<256x128xf32>
    %c0_6 = arith.constant 0 : index
    %c0_7 = arith.constant 0 : index
    %9 = vector.load %arg6[%c0_6, %c0_7] : memref<256x128xf32, #tpu.memory_space<vmem>>, vector<256x128xf32>
    tpu.vector_store %arg6[%c0_6, %c0_7], %8 {strides = array<i32>} : memref<256x128xf32, #tpu.memory_space<vmem>>, vector<256x128xf32>,
    return
  }
  func.func @transform_0(%arg0: i32, %arg1: i32) -> (i32, i32) {
    %c0_i32 = arith.constant 0 : i32
    %c0_i32_0 = arith.constant 0 : i32
    %c0_i32_1 = arith.constant 0 : i32
    return %c0_i32, %c0_i32_0 : i32, i32
  }
  func.func @transform_1(%arg0: i32, %arg1: i32) -> (i32, i32) {
    %c0_i32 = arith.constant 0 : i32
    %c0_i32_0 = arith.constant 0 : i32
    %c0_i32_1 = arith.constant 0 : i32
    return %c0_i32, %c0_i32_0 : i32, i32
  }
  func.func @transform_2(%arg0: i32, %arg1: i32) -> (i32, i32) {
    %c1_i32 = arith.constant 1 : i32
    %0 = arith.muli %arg0, %c1_i32 : i32
    %1 = arith.addi %0, %arg1 : i32
    %c0_i32 = arith.constant 0 : i32
    %c0_i32_0 = arith.constant 0 : i32
    return %1, %c0_i32 : i32, i32
  }
  func.func @transform_3(%arg0: i32, %arg1: i32) -> (i32, i32) {
    %c0_i32 = arith.constant 0 : i32
    %c0_i32_0 = arith.constant 0 : i32
    %c0_i32_1 = arith.constant 0 : i32
    return %c0_i32, %c0_i32_0 : i32, i32
  }
  func.func @transform_4(%arg0: i32, %arg1: i32) -> (i32, i32) {
    %c1_i32 = arith.constant 1 : i32
    %0 = arith.muli %arg0, %c1_i32 : i32
    %1 = arith.addi %0, %arg1 : i32
    %c0_i32 = arith.constant 0 : i32
    %c0_i32_0 = arith.constant 0 : i32
    return %1, %c0_i32 : i32, i32
  }
}

</mosaic_0001>

<llo_original>
// kernel: tpu_custom_call.1
$region0: #{tpu_custom_call.1}
  #allocation0 [shape = 'u32[]', space=smem, size = 0x4, offset = 0x4, fixed_abs, tag = 'smem constant byte address 0x4 - core index']
  #allocation1 [shape = 'u32[144,128]{1,0:T(1,128)}', space=vmem, size = 0x12000, scoped, tag = 'internal scratch']
  #allocation2 [shape = 'bf16[256,128]{1,0:T(8,128)(2,1)}', space=vmem, size = 0x10000, scoped, tag = 'scratch operand']
  %s0 = inlined_call_operand.vmem [shape: bf16[256,64], index: 0, kind: input, shape index: {}]
  %s1 = inlined_call_operand.vmem [shape: bf16[64,128], index: 1, kind: input, shape index: {}]
  %s2 = inlined_call_operand.hbm [shape: bf16[256,256], index: 2, kind: input, shape index: {}]
  %s3 = inlined_call_operand.vmem [shape: f32[1,128], index: 3, kind: input, shape index: {}]
  %s4 = inlined_call_operand.hbm [shape: f32[256,128], index: 4, kind: output, shape index: {}]
  %s5 = sld [smem:[#allocation0]]
  $region34: #{tpu_custom_call.1} parent=0
    _
  %s7 = ssub.s32 1, %s5
  %s8 = scalar_select 0, %s7, %s5
  $region1: #{tpu_custom_call.1} parent=0
    #allocation3 [shape = 'u8[131072]{0}', space=vmem, size = 0x20000, scoped, tag = 'input window, operand 2, single buffered']
    #allocation4 [shape = 's32[1]{0}', space=sflag, size = 0x4, scoped, tag = 'scoped memory for tpu_custom_call.1']
    #allocation5 [shape = 's32[1]{0}', space=sflag, size = 0x4, scoped, tag = 'scoped memory for tpu_custom_call.1']
    #allocation6 [shape = 'u8[131072]{0}', space=vmem, size = 0x20000, scoped, tag = 'output window, operand 0, single buffered']
    %9 = vsyncpa [#allocation4], 0
    %10 = vsyncpa [#allocation5], 0
    // Predicated region
    $region2: #{tpu_custom_call.1} parent=1 // pred_check
      _
    $region3: #{tpu_custom_call.1} parent=1 // pred_check_branch
      %12 = sbr.rel (0) target = $region5
    $region4: #{tpu_custom_call.1} parent=1 // pred_region
      _
    $region5: #{tpu_custom_call.1} parent=1 // pred_fallthru
      _
    // Predicated region
    $region6: #{tpu_custom_call.1} parent=1 // pred_check
      _
    $region7: #{tpu_custom_call.1} parent=1 // pred_check_branch
      %14 = sbr.rel (0) target = $region9
    $region8: #{tpu_custom_call.1} parent=1 // pred_region
      _
    $region9: #{tpu_custom_call.1} parent=1 // pred_fallthru
      _
    // Predicated region
    $region10: #{tpu_custom_call.1} parent=1 // pred_check
      _
    $region11: #{tpu_custom_call.1} parent=1 // pred_check_branch
      %16 = sbr.rel (0) target = $region13
    $region12: #{tpu_custom_call.1} parent=1 // pred_region
      %s17 = sadd.s32 0, 0
      %s18 = smul.u32 32, %s17
      %s20 = ssub.s32 4096, 4096
      %21 = vsyncadd [#allocation4], %s20
      %s22 = smul.addr %s18, 2
      %s23 = smul.addr %s22, 64
      %s24 = scalar_lea.hbm %s2, %s23
      %s25 = sshll.u32 [#allocation3], 4
      %s26 = int_to_ptr.vmem [resolvable:$true] %s25
      %31 = dma.hbm_to_vmem [thread:$0]  %s24, 4096, %s26, [#allocation4], 128, 128, 8
    $region13: #{tpu_custom_call.1} parent=1 // pred_fallthru
      _
    // Predicated region
    $region14: #{tpu_custom_call.1} parent=1 // pred_check
      _
    $region15: #{tpu_custom_call.1} parent=1 // pred_check_branch
      %33 = sbr.rel (0) target = $region17
    $region16: #{tpu_custom_call.1} parent=1 // pred_region
      _
    $region17: #{tpu_custom_call.1} parent=1 // pred_fallthru
      _
    // Predicated region
    $region18: #{tpu_custom_call.1} parent=1 // pred_check
      _
    $region19: #{tpu_custom_call.1} parent=1 // pred_check_branch
      %35 = sbr.rel (0) target = $region21
    $region20: #{tpu_custom_call.1} parent=1 // pred_region
      %36 = dma.done [#allocation4], 4096
    $region21: #{tpu_custom_call.1} parent=1 // pred_fallthru
      _
    %s37 = sadd.s32 0, 0
    %s38 = smul.u32 32, %s37
    %s39 = sadd.s32 0, 0
    %s40 = smul.u32 32, %s39
    %p42 = scmp.eq.s32.totalorder 0, 0
    // Predicated region
    $region22: #{tpu_custom_call.1} parent=1 // pred_check
      %p43 = pneg %p42
    $region23: #{tpu_custom_call.1} parent=1 // pred_check_branch
      %45 = sbr.rel (%p43) target = $region25
    $region24: #{tpu_custom_call.1} parent=1 // pred_region
      %v46 = vld [vmem:[%s0] sm:$0xf]
      %v47 = vld [vmem:[%s0 + $0x4] sm:$0xf]
      %v48 = vld [vmem:[%s0 + $0x8] sm:$0xf]
      %v49 = vld [vmem:[%s0 + $0xc] sm:$0xf]
      %v50 = vld [vmem:[%s0 + $0x10] sm:$0xf]
      %v51 = vld [vmem:[%s0 + $0x14] sm:$0xf]
      %v52 = vld [vmem:[%s0 + $0x18] sm:$0xf]
      %v53 = vld [vmem:[%s0 + $0x1c] sm:$0xf]
      %v54 = vld [vmem:[%s0 + $0x20] sm:$0xf]
      %v55 = vld [vmem:[%s0 + $0x24] sm:$0xf]
      %v56 = vld [vmem:[%s0 + $0x28] sm:$0xf]
      %v57 = vld [vmem:[%s0 + $0x2c] sm:$0xf]
      %v58 = vld [vmem:[%s0 + $0x30] sm:$0xf]
      %v59 = vld [vmem:[%s0 + $0x34] sm:$0xf]
      %v60 = vld [vmem:[%s0 + $0x38] sm:$0xf]
      %v61 = vld [vmem:[%s0 + $0x3c] sm:$0xf]
      %v62 = vld [vmem:[%s0 + $0x40] sm:$0xf]
      %v63 = vld [vmem:[%s0 + $0x44] sm:$0xf]
      %v64 = vld [vmem:[%s0 + $0x48] sm:$0xf]
      %v65 = vld [vmem:[%s0 + $0x4c] sm:$0xf]
      %v66 = vld [vmem:[%s0 + $0x50] sm:$0xf]
      %v67 = vld [vmem:[%s0 + $0x54] sm:$0xf]
      %v68 = vld [vmem:[%s0 + $0x58] sm:$0xf]
      %v69 = vld [vmem:[%s0 + $0x5c] sm:$0xf]
      %v70 = vld [vmem:[%s0 + $0x60] sm:$0xf]
      %v71 = vld [vmem:[%s0 + $0x64] sm:$0xf]
      %v72 = vld [vmem:[%s0 + $0x68] sm:$0xf]
      %v73 = vld [vmem:[%s0 + $0x6c] sm:$0xf]
      %v74 = vld [vmem:[%s0 + $0x70] sm:$0xf]
      %v75 = vld [vmem:[%s0 + $0x74] sm:$0xf]
      %v76 = vld [vmem:[%s0 + $0x78] sm:$0xf]
      %v77 = vld [vmem:[%s0 + $0x7c] sm:$0xf]
      %v78 = vld [vmem:[%s1] sm:$0xf]
      %v79 = vld [vmem:[%s1 + $0x4] sm:$0xf]
      %v80 = vld [vmem:[%s1 + $0x8] sm:$0xf]
      %v81 = vld [vmem:[%s1 + $0xc] sm:$0xf]
      %v82 = vld [vmem:[%s1 + $0x10] sm:$0xf]
      %v83 = vld [vmem:[%s1 + $0x14] sm:$0xf]
      %v84 = vld [vmem:[%s1 + $0x18] sm:$0xf]
      %v85 = vld [vmem:[%s1 + $0x1c] sm:$0xf]
      %v118 = vunpack.c.l.b16 %v46
      %v119 = vunpack.c.l.b16 %v47
      %v120 = vunpack.c.l.b16 %v48
      %v121 = vunpack.c.l.b16 %v49
      %v122 = vunpack.c.l.b16 %v50
      %v123 = vunpack.c.l.b16 %v51
      %v124 = vunpack.c.l.b16 %v52
      %v125 = vunpack.c.l.b16 %v53
      %v126 = vunpack.c.l.b16 %v54
      %v127 = vunpack.c.l.b16 %v55
      %v128 = vunpack.c.l.b16 %v56
      %v129 = vunpack.c.l.b16 %v57
      %v130 = vunpack.c.l.b16 %v58
      %v131 = vunpack.c.l.b16 %v59
      %v132 = vunpack.c.l.b16 %v60
      %v133 = vunpack.c.l.b16 %v61
      %v134 = vunpack.c.l.b16 %v62
      %v135 = vunpack.c.l.b16 %v63
      %v136 = vunpack.c.l.b16 %v64
      %v137 = vunpack.c.l.b16 %v65
      %v138 = vunpack.c.l.b16 %v66
      %v139 = vunpack.c.l.b16 %v67
      %v140 = vunpack.c.l.b16 %v68
      %v141 = vunpack.c.l.b16 %v69
      %v142 = vunpack.c.l.b16 %v70
      %v143 = vunpack.c.l.b16 %v71
      %v144 = vunpack.c.l.b16 %v72
      %v145 = vunpack.c.l.b16 %v73
      %v146 = vunpack.c.l.b16 %v74
      %v147 = vunpack.c.l.b16 %v75
      %v148 = vunpack.c.l.b16 %v76
      %v149 = vunpack.c.l.b16 %v77
      %v150 = vpack.c.b16 %v119, %v118
      %v151 = vpack.c.b16 %v121, %v120
      %v152 = vpack.c.b16 %v123, %v122
      %v153 = vpack.c.b16 %v125, %v124
      %v154 = vpack.c.b16 %v127, %v126
      %v155 = vpack.c.b16 %v129, %v128
      %v156 = vpack.c.b16 %v131, %v130
      %v157 = vpack.c.b16 %v133, %v132
      %v158 = vpack.c.b16 %v135, %v134
      %v159 = vpack.c.b16 %v137, %v136
      %v160 = vpack.c.b16 %v139, %v138
      %v161 = vpack.c.b16 %v141, %v140
      %v162 = vpack.c.b16 %v143, %v142
      %v163 = vpack.c.b16 %v145, %v144
      %v164 = vpack.c.b16 %v147, %v146
      %v165 = vpack.c.b16 %v149, %v148
      %v174 = vunpack.c.l.b16 %v78
      %v175 = vunpack.c.l.b16 %v79
      %v176 = vunpack.c.l.b16 %v80
      %v177 = vunpack.c.l.b16 %v81
      %v178 = vunpack.c.l.b16 %v82
      %v179 = vunpack.c.l.b16 %v83
      %v180 = vunpack.c.l.b16 %v84
      %v181 = vunpack.c.l.b16 %v85
      %v182 = vpack.c.b16 %v175, %v174
      %v183 = vpack.c.b16 %v177, %v176
      %v184 = vpack.c.b16 %v179, %v178
      %v185 = vpack.c.b16 %v181, %v180
      %vm190 = vcmask 523264
      %v192 = vsel %vm190, %v150, 0
      %v195 = vsel %vm190, %v151, 0
      %v198 = vsel %vm190, %v152, 0
      %v201 = vsel %vm190, %v153, 0
      %v204 = vsel %vm190, %v154, 0
      %v207 = vsel %vm190, %v155, 0
      %v210 = vsel %vm190, %v156, 0
      %v213 = vsel %vm190, %v157, 0
      %v216 = vsel %vm190, %v158, 0
      %v219 = vsel %vm190, %v159, 0
      %v222 = vsel %vm190, %v160, 0
      %v225 = vsel %vm190, %v161, 0
      %v228 = vsel %vm190, %v162, 0
      %v231 = vsel %vm190, %v163, 0
      %v234 = vsel %vm190, %v164, 0
      %v237 = vsel %vm190, %v165, 0
      %239 = vmatprep.subr.bf16.mxu0 0
      %240 = vmatpush1.bf16.msra.mxu0 0
      %241 = vmatprep.subr.bf16.mxu0 0
      %242 = vmatpush1.bf16.msra.mxu0 0
      %243 = vmatprep.subr.bf16.mxu0 0
      %244 = vmatpush1.bf16.msra.mxu0 0
      %245 = vmatprep.subr.bf16.mxu0 0
      %246 = vmatpush1.bf16.msra.mxu0 0
      %247 = vmatprep.subr.bf16.mxu0 0
      %248 = vmatpush1.bf16.msra.mxu0 %v185
      %249 = vmatprep.subr.bf16.mxu0 0
      %250 = vmatpush1.bf16.msra.mxu0 %v184
      %251 = vmatprep.subr.bf16.mxu0 0
      %252 = vmatpush1.bf16.msra.mxu0 %v183
      %253 = vmatprep.subr.bf16.mxu0 0
      %254 = vmatpush1.bf16.msra.mxu0 %v182
      %255 = vmatprep.subr.bf16.mxu0 0
      %256 = vmatpush2.bf16.msra.mxu0 0
      %257 = vmatprep.subr.bf16.mxu0 0
      %258 = vmatpush2.bf16.msra.mxu0 0
      %259 = vmatprep.subr.bf16.mxu0 0
      %260 = vmatpush2.bf16.msra.mxu0 0
      %261 = vmatprep.subr.bf16.mxu0 0
      %262 = vmatpush2.bf16.msra.mxu0 0
      %263 = vmatprep.subr.bf16.mxu0 0
      %264 = vmatpush2.bf16.msra.mxu0 0
      %265 = vmatprep.subr.bf16.mxu0 0
      %266 = vmatpush2.bf16.msra.mxu0 0
      %267 = vmatprep.subr.bf16.mxu0 0
      %268 = vmatpush2.bf16.msra.mxu0 0
      %269 = vmatprep.subr.bf16.mxu0 0
      %270 = vmatpush2.bf16.msra.mxu0 0
      %271 = vmatprep.mubr.bf16.mxu0 0
      %272 = vmatmul.mubr.bf16.gmra.mxu0 %v192
      %v273 = vpop.f32.mrf.mxu0
      %v274 = vadd.f32 0.0, %v273
      %v275 = vpop.f32.mrf.mxu0
      %v276 = vpop.f32.mrf.mxu0
      %v277 = vadd.f32 0.0, %v276
      %v278 = vpop.f32.mrf.mxu0
      %279 = vmatprep.mubr.bf16.mxu0 0
      %280 = vmatmul.mubr.bf16.gmra.mxu0 %v195
      %v281 = vpop.f32.mrf.mxu0
      %v282 = vadd.f32 0.0, %v281
      %v283 = vpop.f32.mrf.mxu0
      %v284 = vpop.f32.mrf.mxu0
      %v285 = vadd.f32 0.0, %v284
      %v286 = vpop.f32.mrf.mxu0
      %287 = vmatprep.mubr.bf16.mxu0 0
      %288 = vmatmul.mubr.bf16.gmra.mxu0 %v198
      %v289 = vpop.f32.mrf.mxu0
      %v290 = vadd.f32 0.0, %v289
      %v291 = vpop.f32.mrf.mxu0
      %v292 = vpop.f32.mrf.mxu0
      %v293 = vadd.f32 0.0, %v292
      %v294 = vpop.f32.mrf.mxu0
      %295 = vmatprep.mubr.bf16.mxu0 0
      %296 = vmatmul.mubr.bf16.gmra.mxu0 %v201
      %v297 = vpop.f32.mrf.mxu0
      %v298 = vadd.f32 0.0, %v297
      %v299 = vpop.f32.mrf.mxu0
      %v300 = vpop.f32.mrf.mxu0
      %v301 = vadd.f32 0.0, %v300
      %v302 = vpop.f32.mrf.mxu0
      %303 = vmatprep.mubr.bf16.mxu0 0
      %304 = vmatmul.mubr.bf16.gmra.mxu0 %v204
      %v305 = vpop.f32.mrf.mxu0
      %v306 = vadd.f32 0.0, %v305
      %v307 = vpop.f32.mrf.mxu0
      %v308 = vpop.f32.mrf.mxu0
      %v309 = vadd.f32 0.0, %v308
      %v310 = vpop.f32.mrf.mxu0
      %311 = vmatprep.mubr.bf16.mxu0 0
      %312 = vmatmul.mubr.bf16.gmra.mxu0 %v207
      %v313 = vpop.f32.mrf.mxu0
      %v314 = vadd.f32 0.0, %v313
      %v315 = vpop.f32.mrf.mxu0
      %v316 = vpop.f32.mrf.mxu0
      %v317 = vadd.f32 0.0, %v316
      %v318 = vpop.f32.mrf.mxu0
      %319 = vmatprep.mubr.bf16.mxu0 0
      %320 = vmatmul.mubr.bf16.gmra.mxu0 %v210
      %v321 = vpop.f32.mrf.mxu0
      %v322 = vadd.f32 0.0, %v321
      %v323 = vpop.f32.mrf.mxu0
      %v324 = vpop.f32.mrf.mxu0
      %v325 = vadd.f32 0.0, %v324
      %v326 = vpop.f32.mrf.mxu0
      %327 = vmatprep.mubr.bf16.mxu0 0
      %328 = vmatmul.mubr.bf16.gmra.mxu0 %v213
      %v329 = vpop.f32.mrf.mxu0
      %v330 = vadd.f32 0.0, %v329
      %v331 = vpop.f32.mrf.mxu0
      %v332 = vpop.f32.mrf.mxu0
      %v333 = vadd.f32 0.0, %v332
      %v334 = vpop.f32.mrf.mxu0
      %335 = vmatprep.mubr.bf16.mxu0 0
      %336 = vmatmul.mubr.bf16.gmra.mxu0 %v216
      %v337 = vpop.f32.mrf.mxu0
      %v338 = vadd.f32 0.0, %v337
      %v339 = vpop.f32.mrf.mxu0
      %v340 = vpop.f32.mrf.mxu0
      %v341 = vadd.f32 0.0, %v340
      %v342 = vpop.f32.mrf.mxu0
      %343 = vmatprep.mubr.bf16.mxu0 0
      %344 = vmatmul.mubr.bf16.gmra.mxu0 %v219
      %v345 = vpop.f32.mrf.mxu0
      %v346 = vadd.f32 0.0, %v345
      %v347 = vpop.f32.mrf.mxu0
      %v348 = vpop.f32.mrf.mxu0
      %v349 = vadd.f32 0.0, %v348
      %v350 = vpop.f32.mrf.mxu0
      %351 = vmatprep.mubr.bf16.mxu0 0
      %352 = vmatmul.mubr.bf16.gmra.mxu0 %v222
      %v353 = vpop.f32.mrf.mxu0
      %v354 = vadd.f32 0.0, %v353
      %v355 = vpop.f32.mrf.mxu0
      %v356 = vpop.f32.mrf.mxu0
      %v357 = vadd.f32 0.0, %v356
      %v358 = vpop.f32.mrf.mxu0
      %359 = vmatprep.mubr.bf16.mxu0 0
      %360 = vmatmul.mubr.bf16.gmra.mxu0 %v225
      %v361 = vpop.f32.mrf.mxu0
      %v362 = vadd.f32 0.0, %v361
      %v363 = vpop.f32.mrf.mxu0
      %v364 = vpop.f32.mrf.mxu0
      %v365 = vadd.f32 0.0, %v364
      %v366 = vpop.f32.mrf.mxu0
      %367 = vmatprep.mubr.bf16.mxu0 0
      %368 = vmatmul.mubr.bf16.gmra.mxu0 %v228
      %v369 = vpop.f32.mrf.mxu0
      %v370 = vadd.f32 0.0, %v369
      %v371 = vpop.f32.mrf.mxu0
      %v372 = vpop.f32.mrf.mxu0
      %v373 = vadd.f32 0.0, %v372
      %v374 = vpop.f32.mrf.mxu0
      %375 = vmatprep.mubr.bf16.mxu0 0
      %376 = vmatmul.mubr.bf16.gmra.mxu0 %v231
      %v377 = vpop.f32.mrf.mxu0
      %v378 = vadd.f32 0.0, %v377
      %v379 = vpop.f32.mrf.mxu0
      %v380 = vpop.f32.mrf.mxu0
      %v381 = vadd.f32 0.0, %v380
      %v382 = vpop.f32.mrf.mxu0
      %383 = vmatprep.mubr.bf16.mxu0 0
      %384 = vmatmul.mubr.bf16.gmra.mxu0 %v234
      %v385 = vpop.f32.mrf.mxu0
      %v386 = vadd.f32 0.0, %v385
      %v387 = vpop.f32.mrf.mxu0
      %v388 = vpop.f32.mrf.mxu0
      %v389 = vadd.f32 0.0, %v388
      %v390 = vpop.f32.mrf.mxu0
      %391 = vmatprep.mubr.bf16.mxu0 0
      %392 = vmatmul.mubr.bf16.gmra.mxu0 %v237
      %v393 = vpop.f32.mrf.mxu0
      %v394 = vadd.f32 0.0, %v393
      %v395 = vpop.f32.mrf.mxu0
      %v396 = vpop.f32.mrf.mxu0
      %v397 = vadd.f32 0.0, %v396
      %v398 = vpop.f32.mrf.mxu0
      %399 = vdwg.mxu0
      %v400 = vpack.c.bf16 %v277, %v274
      %v401 = vpack.c.bf16 %v285, %v282
      %v402 = vpack.c.bf16 %v293, %v290
      %v403 = vpack.c.bf16 %v301, %v298
      %v404 = vpack.c.bf16 %v309, %v306
      %v405 = vpack.c.bf16 %v317, %v314
      %v406 = vpack.c.bf16 %v325, %v322
      %v407 = vpack.c.bf16 %v333, %v330
      %v408 = vpack.c.bf16 %v341, %v338
      %v409 = vpack.c.bf16 %v349, %v346
      %v410 = vpack.c.bf16 %v357, %v354
      %v411 = vpack.c.bf16 %v365, %v362
      %v412 = vpack.c.bf16 %v373, %v370
      %v413 = vpack.c.bf16 %v381, %v378
      %v414 = vpack.c.bf16 %v389, %v386
      %v415 = vpack.c.bf16 %v397, %v394
      %v432 = vunpack.c.l.b16 %v400
      %v433 = vunpack.c.h.b16 %v400
      %v434 = vunpack.c.l.b16 %v401
      %v435 = vunpack.c.h.b16 %v401
      %v436 = vunpack.c.l.b16 %v402
      %v437 = vunpack.c.h.b16 %v402
      %v438 = vunpack.c.l.b16 %v403
      %v439 = vunpack.c.h.b16 %v403
      %v440 = vunpack.c.l.b16 %v404
      %v441 = vunpack.c.h.b16 %v404
      %v442 = vunpack.c.l.b16 %v405
      %v443 = vunpack.c.h.b16 %v405
      %v444 = vunpack.c.l.b16 %v406
      %v445 = vunpack.c.h.b16 %v406
      %v446 = vunpack.c.l.b16 %v407
      %v447 = vunpack.c.h.b16 %v407
      %v448 = vunpack.c.l.b16 %v408
      %v449 = vunpack.c.h.b16 %v408
      %v450 = vunpack.c.l.b16 %v409
      %v451 = vunpack.c.h.b16 %v409
      %v452 = vunpack.c.l.b16 %v410
      %v453 = vunpack.c.h.b16 %v410
      %v454 = vunpack.c.l.b16 %v411
      %v455 = vunpack.c.h.b16 %v411
      %v456 = vunpack.c.l.b16 %v412
      %v457 = vunpack.c.h.b16 %v412
      %v458 = vunpack.c.l.b16 %v413
      %v459 = vunpack.c.h.b16 %v413
      %v460 = vunpack.c.l.b16 %v414
      %v461 = vunpack.c.h.b16 %v414
      %v462 = vunpack.c.l.b16 %v415
      %v463 = vunpack.c.h.b16 %v415
      %v464 = vpack.c.b16 %v432, %v432
      %v465 = vpack.c.b16 %v433, %v433
      %v466 = vpack.c.b16 %v434, %v434
      %v467 = vpack.c.b16 %v435, %v435
      %v468 = vpack.c.b16 %v436, %v436
      %v469 = vpack.c.b16 %v437, %v437
      %v470 = vpack.c.b16 %v438, %v438
      %v471 = vpack.c.b16 %v439, %v439
      %v472 = vpack.c.b16 %v440, %v440
      %v473 = vpack.c.b16 %v441, %v441
      %v474 = vpack.c.b16 %v442, %v442
      %v475 = vpack.c.b16 %v443, %v443
      %v476 = vpack.c.b16 %v444, %v444
      %v477 = vpack.c.b16 %v445, %v445
      %v478 = vpack.c.b16 %v446, %v446
      %v479 = vpack.c.b16 %v447, %v447
      %v480 = vpack.c.b16 %v448, %v448
      %v481 = vpack.c.b16 %v449, %v449
      %v482 = vpack.c.b16 %v450, %v450
      %v483 = vpack.c.b16 %v451, %v451
      %v484 = vpack.c.b16 %v452, %v452
      %v485 = vpack.c.b16 %v453, %v453
      %v486 = vpack.c.b16 %v454, %v454
      %v487 = vpack.c.b16 %v455, %v455
      %v488 = vpack.c.b16 %v456, %v456
      %v489 = vpack.c.b16 %v457, %v457
      %v490 = vpack.c.b16 %v458, %v458
      %v491 = vpack.c.b16 %v459, %v459
      %v492 = vpack.c.b16 %v460, %v460
      %v493 = vpack.c.b16 %v461, %v461
      %v494 = vpack.c.b16 %v462, %v462
      %v495 = vpack.c.b16 %v463, %v463
      %528 = vst [vmem:[#allocation2] sm:$0xf] %v464
      %529 = vst [vmem:[#allocation2 + $0x4] sm:$0xf] %v465
      %530 = vst [vmem:[#allocation2 + $0x8] sm:$0xf] %v466
      %531 = vst [vmem:[#allocation2 + $0xc] sm:$0xf] %v467
      %532 = vst [vmem:[#allocation2 + $0x10] sm:$0xf] %v468
      %533 = vst [vmem:[#allocation2 + $0x14] sm:$0xf] %v469
      %534 = vst [vmem:[#allocation2 + $0x18] sm:$0xf] %v470
      %535 = vst [vmem:[#allocation2 + $0x1c] sm:$0xf] %v471
      %536 = vst [vmem:[#allocation2 + $0x20] sm:$0xf] %v472
      %537 = vst [vmem:[#allocation2 + $0x24] sm:$0xf] %v473
      %538 = vst [vmem:[#allocation2 + $0x28] sm:$0xf] %v474
      %539 = vst [vmem:[#allocation2 + $0x2c] sm:$0xf] %v475
      %540 = vst [vmem:[#allocation2 + $0x30] sm:$0xf] %v476
      %541 = vst [vmem:[#allocation2 + $0x34] sm:$0xf] %v477
      %542 = vst [vmem:[#allocation2 + $0x38] sm:$0xf] %v478
      %543 = vst [vmem:[#allocation2 + $0x3c] sm:$0xf] %v479
      %544 = vst [vmem:[#allocation2 + $0x40] sm:$0xf] %v480
      %545 = vst [vmem:[#allocation2 + $0x44] sm:$0xf] %v481
      %546 = vst [vmem:[#allocation2 + $0x48] sm:$0xf] %v482
      %547 = vst [vmem:[#allocation2 + $0x4c] sm:$0xf] %v483
      %548 = vst [vmem:[#allocation2 + $0x50] sm:$0xf] %v484
      %549 = vst [vmem:[#allocation2 + $0x54] sm:$0xf] %v485
      %550 = vst [vmem:[#allocation2 + $0x58] sm:$0xf] %v486
      %551 = vst [vmem:[#allocation2 + $0x5c] sm:$0xf] %v487
      %552 = vst [vmem:[#allocation2 + $0x60] sm:$0xf] %v488
      %553 = vst [vmem:[#allocation2 + $0x64] sm:$0xf] %v489
      %554 = vst [vmem:[#allocation2 + $0x68] sm:$0xf] %v490
      %555 = vst [vmem:[#allocation2 + $0x6c] sm:$0xf] %v491
      %556 = vst [vmem:[#allocation2 + $0x70] sm:$0xf] %v492
      %557 = vst [vmem:[#allocation2 + $0x74] sm:$0xf] %v493
      %558 = vst [vmem:[#allocation2 + $0x78] sm:$0xf] %v494
      %559 = vst [vmem:[#allocation2 + $0x7c] sm:$0xf] %v495
    $region25: #{tpu_custom_call.1} parent=1 // pred_fallthru
      _
    %v560 = vld [vmem:[#allocation3] sm:$0xff]
    %v561 = vld [vmem:[#allocation3 + $0x8] sm:$0xff]
    %v562 = vld [vmem:[#allocation3 + $0x10] sm:$0xff]
    %v563 = vld [vmem:[#allocation3 + $0x18] sm:$0xff]
    %v564 = vld [vmem:[#allocation3 + $0x20] sm:$0xff]
    %v565 = vld [vmem:[#allocation3 + $0x28] sm:$0xff]
    %v566 = vld [vmem:[#allocation3 + $0x30] sm:$0xff]
    %v567 = vld [vmem:[#allocation3 + $0x38] sm:$0xff]
    %v568 = vld [vmem:[#allocation3 + $0x40] sm:$0xff]
    %v569 = vld [vmem:[#allocation3 + $0x48] sm:$0xff]
    %v570 = vld [vmem:[#allocation3 + $0x50] sm:$0xff]
    %v571 = vld [vmem:[#allocation3 + $0x58] sm:$0xff]
    %v572 = vld [vmem:[#allocation3 + $0x60] sm:$0xff]
    %v573 = vld [vmem:[#allocation3 + $0x68] sm:$0xff]
    %v574 = vld [vmem:[#allocation3 + $0x70] sm:$0xff]
    %v575 = vld [vmem:[#allocation3 + $0x78] sm:$0xff]
    %v576 = vld [vmem:[#allocation3 + $0x80] sm:$0xff]
    %v577 = vld [vmem:[#allocation3 + $0x88] sm:$0xff]
    %v578 = vld [vmem:[#allocation3 + $0x90] sm:$0xff]
    %v579 = vld [vmem:[#allocation3 + $0x98] sm:$0xff]
    %v580 = vld [vmem:[#allocation3 + $0xa0] sm:$0xff]
    %v581 = vld [vmem:[#allocation3 + $0xa8] sm:$0xff]
    %v582 = vld [vmem:[#allocation3 + $0xb0] sm:$0xff]
    %v583 = vld [vmem:[#allocation3 + $0xb8] sm:$0xff]
    %v584 = vld [vmem:[#allocation3 + $0xc0] sm:$0xff]
    %v585 = vld [vmem:[#allocation3 + $0xc8] sm:$0xff]
    %v586 = vld [vmem:[#allocation3 + $0xd0] sm:$0xff]
    %v587 = vld [vmem:[#allocation3 + $0xd8] sm:$0xff]
    %v588 = vld [vmem:[#allocation3 + $0xe0] sm:$0xff]
    %v589 = vld [vmem:[#allocation3 + $0xe8] sm:$0xff]
    %v590 = vld [vmem:[#allocation3 + $0xf0] sm:$0xff]
    %v591 = vld [vmem:[#allocation3 + $0xf8] sm:$0xff]
    %v592 = vld [vmem:[#allocation2] sm:$0xf]
    %v593 = vld [vmem:[#allocation2 + $0x4] sm:$0xf]
    %v594 = vld [vmem:[#allocation2 + $0x8] sm:$0xf]
    %v595 = vld [vmem:[#allocation2 + $0xc] sm:$0xf]
    %v596 = vld [vmem:[#allocation2 + $0x10] sm:$0xf]
    %v597 = vld [vmem:[#allocation2 + $0x14] sm:$0xf]
    %v598 = vld [vmem:[#allocation2 + $0x18] sm:$0xf]
    %v599 = vld [vmem:[#allocation2 + $0x1c] sm:$0xf]
    %v600 = vld [vmem:[#allocation2 + $0x20] sm:$0xf]
    %v601 = vld [vmem:[#allocation2 + $0x24] sm:$0xf]
    %v602 = vld [vmem:[#allocation2 + $0x28] sm:$0xf]
    %v603 = vld [vmem:[#allocation2 + $0x2c] sm:$0xf]
    %v604 = vld [vmem:[#allocation2 + $0x30] sm:$0xf]
    %v605 = vld [vmem:[#allocation2 + $0x34] sm:$0xf]
    %v606 = vld [vmem:[#allocation2 + $0x38] sm:$0xf]
    %v607 = vld [vmem:[#allocation2 + $0x3c] sm:$0xf]
    %v608 = vld [vmem:[#allocation2 + $0x40] sm:$0xf]
    %v609 = vld [vmem:[#allocation2 + $0x44] sm:$0xf]
    %v610 = vld [vmem:[#allocation2 + $0x48] sm:$0xf]
    %v611 = vld [vmem:[#allocation2 + $0x4c] sm:$0xf]
    %v612 = vld [vmem:[#allocation2 + $0x50] sm:$0xf]
    %v613 = vld [vmem:[#allocation2 + $0x54] sm:$0xf]
    %v614 = vld [vmem:[#allocation2 + $0x58] sm:$0xf]
    %v615 = vld [vmem:[#allocation2 + $0x5c] sm:$0xf]
    %v616 = vld [vmem:[#allocation2 + $0x60] sm:$0xf]
    %v617 = vld [vmem:[#allocation2 + $0x64] sm:$0xf]
    %v618 = vld [vmem:[#allocation2 + $0x68] sm:$0xf]
    %v619 = vld [vmem:[#allocation2 + $0x6c] sm:$0xf]
    %v620 = vld [vmem:[#allocation2 + $0x70] sm:$0xf]
    %v621 = vld [vmem:[#allocation2 + $0x74] sm:$0xf]
    %v622 = vld [vmem:[#allocation2 + $0x78] sm:$0xf]
    %v623 = vld [vmem:[#allocation2 + $0x7c] sm:$0xf]
    %v624 = vld [vmem:[%s3] sm:$0x1]
    %v626 = vlaneseq
    %v627 = vshrl.u32 %v626, 7
    %v628 = vsub.s32 0, %v627
    %v629 = vrot.slane %v624, %v628
    %v663 = vunpack.c.l.b16 %v560
    %v664 = vunpack.c.h.b16 %v560
    %v665 = vunpack.c.l.b16 %v561
    %v666 = vunpack.c.h.b16 %v561
    %v667 = vunpack.c.l.b16 %v562
    %v668 = vunpack.c.h.b16 %v562
    %v669 = vunpack.c.l.b16 %v563
    %v670 = vunpack.c.h.b16 %v563
    %v671 = vunpack.c.l.b16 %v564
    %v672 = vunpack.c.h.b16 %v564
    %v673 = vunpack.c.l.b16 %v565
    %v674 = vunpack.c.h.b16 %v565
    %v675 = vunpack.c.l.b16 %v566
    %v676 = vunpack.c.h.b16 %v566
    %v677 = vunpack.c.l.b16 %v567
    %v678 = vunpack.c.h.b16 %v567
    %v679 = vunpack.c.l.b16 %v568
    %v680 = vunpack.c.h.b16 %v568
    %v681 = vunpack.c.l.b16 %v569
    %v682 = vunpack.c.h.b16 %v569
    %v683 = vunpack.c.l.b16 %v570
    %v684 = vunpack.c.h.b16 %v570
    %v685 = vunpack.c.l.b16 %v571
    %v686 = vunpack.c.h.b16 %v571
    %v687 = vunpack.c.l.b16 %v572
    %v688 = vunpack.c.h.b16 %v572
    %v689 = vunpack.c.l.b16 %v573
    %v690 = vunpack.c.h.b16 %v573
    %v691 = vunpack.c.l.b16 %v574
    %v692 = vunpack.c.h.b16 %v574
    %v693 = vunpack.c.l.b16 %v575
    %v694 = vunpack.c.h.b16 %v575
    %v695 = vunpack.c.l.b16 %v576
    %v696 = vunpack.c.h.b16 %v576
    %v697 = vunpack.c.l.b16 %v577
    %v698 = vunpack.c.h.b16 %v577
    %v699 = vunpack.c.l.b16 %v578
    %v700 = vunpack.c.h.b16 %v578
    %v701 = vunpack.c.l.b16 %v579
    %v702 = vunpack.c.h.b16 %v579
    %v703 = vunpack.c.l.b16 %v580
    %v704 = vunpack.c.h.b16 %v580
    %v705 = vunpack.c.l.b16 %v581
    %v706 = vunpack.c.h.b16 %v581
    %v707 = vunpack.c.l.b16 %v582
    %v708 = vunpack.c.h.b16 %v582
    %v709 = vunpack.c.l.b16 %v583
    %v710 = vunpack.c.h.b16 %v583
    %v711 = vunpack.c.l.b16 %v584
    %v712 = vunpack.c.h.b16 %v584
    %v713 = vunpack.c.l.b16 %v585
    %v714 = vunpack.c.h.b16 %v585
    %v715 = vunpack.c.l.b16 %v586
    %v716 = vunpack.c.h.b16 %v586
    %v717 = vunpack.c.l.b16 %v587
    %v718 = vunpack.c.h.b16 %v587
    %v719 = vunpack.c.l.b16 %v588
    %v720 = vunpack.c.h.b16 %v588
    %v721 = vunpack.c.l.b16 %v589
    %v722 = vunpack.c.h.b16 %v589
    %v723 = vunpack.c.l.b16 %v590
    %v724 = vunpack.c.h.b16 %v590
    %v725 = vunpack.c.l.b16 %v591
    %v726 = vunpack.c.h.b16 %v591
    %v727 = vpack.c.b16 %v665, %v663
    %v728 = vpack.c.b16 %v666, %v664
    %v729 = vpack.c.b16 %v669, %v667
    %v730 = vpack.c.b16 %v670, %v668
    %v731 = vpack.c.b16 %v673, %v671
    %v732 = vpack.c.b16 %v674, %v672
    %v733 = vpack.c.b16 %v677, %v675
    %v734 = vpack.c.b16 %v678, %v676
    %v735 = vpack.c.b16 %v681, %v679
    %v736 = vpack.c.b16 %v682, %v680
    %v737 = vpack.c.b16 %v685, %v683
    %v738 = vpack.c.b16 %v686, %v684
    %v739 = vpack.c.b16 %v689, %v687
    %v740 = vpack.c.b16 %v690, %v688
    %v741 = vpack.c.b16 %v693, %v691
    %v742 = vpack.c.b16 %v694, %v692
    %v743 = vpack.c.b16 %v697, %v695
    %v744 = vpack.c.b16 %v698, %v696
    %v745 = vpack.c.b16 %v701, %v699
    %v746 = vpack.c.b16 %v702, %v700
    %v747 = vpack.c.b16 %v705, %v703
    %v748 = vpack.c.b16 %v706, %v704
    %v749 = vpack.c.b16 %v709, %v707
    %v750 = vpack.c.b16 %v710, %v708
    %v751 = vpack.c.b16 %v713, %v711
    %v752 = vpack.c.b16 %v714, %v712
    %v753 = vpack.c.b16 %v717, %v715
    %v754 = vpack.c.b16 %v718, %v716
    %v755 = vpack.c.b16 %v721, %v719
    %v756 = vpack.c.b16 %v722, %v720
    %v757 = vpack.c.b16 %v725, %v723
    %v758 = vpack.c.b16 %v726, %v724
    %v823 = vunpack.c.l.b16 %v592
    %v824 = vunpack.c.l.b16 %v593
    %v825 = vunpack.c.l.b16 %v594
    %v826 = vunpack.c.l.b16 %v595
    %v827 = vunpack.c.l.b16 %v596
    %v828 = vunpack.c.l.b16 %v597
    %v829 = vunpack.c.l.b16 %v598
    %v830 = vunpack.c.l.b16 %v599
    %v831 = vunpack.c.l.b16 %v600
    %v832 = vunpack.c.l.b16 %v601
    %v833 = vunpack.c.l.b16 %v602
    %v834 = vunpack.c.l.b16 %v603
    %v835 = vunpack.c.l.b16 %v604
    %v836 = vunpack.c.l.b16 %v605
    %v837 = vunpack.c.l.b16 %v606
    %v838 = vunpack.c.l.b16 %v607
    %v839 = vunpack.c.l.b16 %v608
    %v840 = vunpack.c.l.b16 %v609
    %v841 = vunpack.c.l.b16 %v610
    %v842 = vunpack.c.l.b16 %v611
    %v843 = vunpack.c.l.b16 %v612
    %v844 = vunpack.c.l.b16 %v613
    %v845 = vunpack.c.l.b16 %v614
    %v846 = vunpack.c.l.b16 %v615
    %v847 = vunpack.c.l.b16 %v616
    %v848 = vunpack.c.l.b16 %v617
    %v849 = vunpack.c.l.b16 %v618
    %v850 = vunpack.c.l.b16 %v619
    %v851 = vunpack.c.l.b16 %v620
    %v852 = vunpack.c.l.b16 %v621
    %v853 = vunpack.c.l.b16 %v622
    %v854 = vunpack.c.l.b16 %v623
    %v855 = vpack.c.b16 %v824, %v823
    %v856 = vpack.c.b16 %v826, %v825
    %v857 = vpack.c.b16 %v828, %v827
    %v858 = vpack.c.b16 %v830, %v829
    %v859 = vpack.c.b16 %v832, %v831
    %v860 = vpack.c.b16 %v834, %v833
    %v861 = vpack.c.b16 %v836, %v835
    %v862 = vpack.c.b16 %v838, %v837
    %v863 = vpack.c.b16 %v840, %v839
    %v864 = vpack.c.b16 %v842, %v841
    %v865 = vpack.c.b16 %v844, %v843
    %v866 = vpack.c.b16 %v846, %v845
    %v867 = vpack.c.b16 %v848, %v847
    %v868 = vpack.c.b16 %v850, %v849
    %v869 = vpack.c.b16 %v852, %v851
    %v870 = vpack.c.b16 %v854, %v853
    %887 = vmatprep.subr.bf16.mxu0 0
    %888 = vmatpush1.bf16.msra.mxu0 %v862
    %889 = vmatprep.subr.bf16.mxu0 0
    %890 = vmatpush1.bf16.msra.mxu0 %v861
    %891 = vmatprep.subr.bf16.mxu0 0
    %892 = vmatpush1.bf16.msra.mxu0 %v860
    %893 = vmatprep.subr.bf16.mxu0 0
    %894 = vmatpush1.bf16.msra.mxu0 %v859
    %895 = vmatprep.subr.bf16.mxu0 0
    %896 = vmatpush1.bf16.msra.mxu0 %v858
    %897 = vmatprep.subr.bf16.mxu0 0
    %898 = vmatpush1.bf16.msra.mxu0 %v857
    %899 = vmatprep.subr.bf16.mxu0 0
    %900 = vmatpush1.bf16.msra.mxu0 %v856
    %901 = vmatprep.subr.bf16.mxu0 0
    %902 = vmatpush1.bf16.msra.mxu0 %v855
    %903 = vmatprep.subr.bf16.mxu0 0
    %904 = vmatpush2.bf16.msra.mxu0 %v870
    %905 = vmatprep.subr.bf16.mxu0 0
    %906 = vmatpush2.bf16.msra.mxu0 %v869
    %907 = vmatprep.subr.bf16.mxu0 0
    %908 = vmatpush2.bf16.msra.mxu0 %v868
    %909 = vmatprep.subr.bf16.mxu0 0
    %910 = vmatpush2.bf16.msra.mxu0 %v867
    %911 = vmatprep.subr.bf16.mxu0 0
    %912 = vmatpush2.bf16.msra.mxu0 %v866
    %913 = vmatprep.subr.bf16.mxu0 0
    %914 = vmatpush2.bf16.msra.mxu0 %v865
    %915 = vmatprep.subr.bf16.mxu0 0
    %916 = vmatpush2.bf16.msra.mxu0 %v864
    %917 = vmatprep.subr.bf16.mxu0 0
    %918 = vmatpush2.bf16.msra.mxu0 %v863
    %919 = vmatprep.mubr.bf16.mxu0 %v728
    %920 = vmatmul.mubr.bf16.gmra.mxu0 %v727
    %v921 = vpop.f32.mrf.mxu0
    %v922 = vadd.f32 %v629, %v921
    %v923 = vpop.f32.mrf.mxu0
    %v924 = vpop.f32.mrf.mxu0
    %v925 = vadd.f32 %v629, %v924
    %v926 = vpop.f32.mrf.mxu0
    %927 = vmatprep.mubr.bf16.mxu0 %v730
    %928 = vmatmul.mubr.bf16.gmra.mxu0 %v729
    %v929 = vpop.f32.mrf.mxu0
    %v930 = vadd.f32 %v629, %v929
    %v931 = vpop.f32.mrf.mxu0
    %v932 = vpop.f32.mrf.mxu0
    %v933 = vadd.f32 %v629, %v932
    %v934 = vpop.f32.mrf.mxu0
    %935 = vmatprep.mubr.bf16.mxu0 %v732
    %936 = vmatmul.mubr.bf16.gmra.mxu0 %v731
    %v937 = vpop.f32.mrf.mxu0
    %v938 = vadd.f32 %v629, %v937
    %v939 = vpop.f32.mrf.mxu0
    %v940 = vpop.f32.mrf.mxu0
    %v941 = vadd.f32 %v629, %v940
    %v942 = vpop.f32.mrf.mxu0
    %943 = vmatprep.mubr.bf16.mxu0 %v734
    %944 = vmatmul.mubr.bf16.gmra.mxu0 %v733
    %v945 = vpop.f32.mrf.mxu0
    %v946 = vadd.f32 %v629, %v945
    %v947 = vpop.f32.mrf.mxu0
    %v948 = vpop.f32.mrf.mxu0
    %v949 = vadd.f32 %v629, %v948
    %v950 = vpop.f32.mrf.mxu0
    %951 = vmatprep.mubr.bf16.mxu0 %v736
    %952 = vmatmul.mubr.bf16.gmra.mxu0 %v735
    %v953 = vpop.f32.mrf.mxu0
    %v954 = vadd.f32 %v629, %v953
    %v955 = vpop.f32.mrf.mxu0
    %v956 = vpop.f32.mrf.mxu0
    %v957 = vadd.f32 %v629, %v956
    %v958 = vpop.f32.mrf.mxu0
    %959 = vmatprep.mubr.bf16.mxu0 %v738
    %960 = vmatmul.mubr.bf16.gmra.mxu0 %v737
    %v961 = vpop.f32.mrf.mxu0
    %v962 = vadd.f32 %v629, %v961
    %v963 = vpop.f32.mrf.mxu0
    %v964 = vpop.f32.mrf.mxu0
    %v965 = vadd.f32 %v629, %v964
    %v966 = vpop.f32.mrf.mxu0
    %967 = vmatprep.mubr.bf16.mxu0 %v740
    %968 = vmatmul.mubr.bf16.gmra.mxu0 %v739
    %v969 = vpop.f32.mrf.mxu0
    %v970 = vadd.f32 %v629, %v969
    %v971 = vpop.f32.mrf.mxu0
    %v972 = vpop.f32.mrf.mxu0
    %v973 = vadd.f32 %v629, %v972
    %v974 = vpop.f32.mrf.mxu0
    %975 = vmatprep.mubr.bf16.mxu0 %v742
    %976 = vmatmul.mubr.bf16.gmra.mxu0 %v741
    %v977 = vpop.f32.mrf.mxu0
    %v978 = vadd.f32 %v629, %v977
    %v979 = vpop.f32.mrf.mxu0
    %v980 = vpop.f32.mrf.mxu0
    %v981 = vadd.f32 %v629, %v980
    %v982 = vpop.f32.mrf.mxu0
    %983 = vmatprep.mubr.bf16.mxu0 %v744
    %984 = vmatmul.mubr.bf16.gmra.mxu0 %v743
    %v985 = vpop.f32.mrf.mxu0
    %v986 = vadd.f32 %v629, %v985
    %v987 = vpop.f32.mrf.mxu0
    %v988 = vpop.f32.mrf.mxu0
    %v989 = vadd.f32 %v629, %v988
    %v990 = vpop.f32.mrf.mxu0
    %991 = vmatprep.mubr.bf16.mxu0 %v746
    %992 = vmatmul.mubr.bf16.gmra.mxu0 %v745
    %v993 = vpop.f32.mrf.mxu0
    %v994 = vadd.f32 %v629, %v993
    %v995 = vpop.f32.mrf.mxu0
    %v996 = vpop.f32.mrf.mxu0
    %v997 = vadd.f32 %v629, %v996
    %v998 = vpop.f32.mrf.mxu0
    %999 = vmatprep.mubr.bf16.mxu0 %v748
    %1000 = vmatmul.mubr.bf16.gmra.mxu0 %v747
    %v1001 = vpop.f32.mrf.mxu0
    %v1002 = vadd.f32 %v629, %v1001
    %v1003 = vpop.f32.mrf.mxu0
    %v1004 = vpop.f32.mrf.mxu0
    %v1005 = vadd.f32 %v629, %v1004
    %v1006 = vpop.f32.mrf.mxu0
    %1007 = vmatprep.mubr.bf16.mxu0 %v750
    %1008 = vmatmul.mubr.bf16.gmra.mxu0 %v749
    %v1009 = vpop.f32.mrf.mxu0
    %v1010 = vadd.f32 %v629, %v1009
    %v1011 = vpop.f32.mrf.mxu0
    %v1012 = vpop.f32.mrf.mxu0
    %v1013 = vadd.f32 %v629, %v1012
    %v1014 = vpop.f32.mrf.mxu0
    %1015 = vmatprep.mubr.bf16.mxu0 %v752
    %1016 = vmatmul.mubr.bf16.gmra.mxu0 %v751
    %v1017 = vpop.f32.mrf.mxu0
    %v1018 = vadd.f32 %v629, %v1017
    %v1019 = vpop.f32.mrf.mxu0
    %v1020 = vpop.f32.mrf.mxu0
    %v1021 = vadd.f32 %v629, %v1020
    %v1022 = vpop.f32.mrf.mxu0
    %1023 = vmatprep.mubr.bf16.mxu0 %v754
    %1024 = vmatmul.mubr.bf16.gmra.mxu0 %v753
    %v1025 = vpop.f32.mrf.mxu0
    %v1026 = vadd.f32 %v629, %v1025
    %v1027 = vpop.f32.mrf.mxu0
    %v1028 = vpop.f32.mrf.mxu0
    %v1029 = vadd.f32 %v629, %v1028
    %v1030 = vpop.f32.mrf.mxu0
    %1031 = vmatprep.mubr.bf16.mxu0 %v756
    %1032 = vmatmul.mubr.bf16.gmra.mxu0 %v755
    %v1033 = vpop.f32.mrf.mxu0
    %v1034 = vadd.f32 %v629, %v1033
    %v1035 = vpop.f32.mrf.mxu0
    %v1036 = vpop.f32.mrf.mxu0
    %v1037 = vadd.f32 %v629, %v1036
    %v1038 = vpop.f32.mrf.mxu0
    %1039 = vmatprep.mubr.bf16.mxu0 %v758
    %1040 = vmatmul.mubr.bf16.gmra.mxu0 %v757
    %v1041 = vpop.f32.mrf.mxu0
    %v1042 = vadd.f32 %v629, %v1041
    %v1043 = vpop.f32.mrf.mxu0
    %v1044 = vpop.f32.mrf.mxu0
    %v1045 = vadd.f32 %v629, %v1044
    %v1046 = vpop.f32.mrf.mxu0
    %1047 = vdwg.mxu0
    %1048 = vst [vmem:[#allocation6] sm:$0xff] %v922
    %1049 = vst [vmem:[#allocation6 + $0x8] sm:$0xff] %v925
    %1050 = vst [vmem:[#allocation6 + $0x10] sm:$0xff] %v930
    %1051 = vst [vmem:[#allocation6 + $0x18] sm:$0xff] %v933
    %1052 = vst [vmem:[#allocation6 + $0x20] sm:$0xff] %v938
    %1053 = vst [vmem:[#allocation6 + $0x28] sm:$0xff] %v941
    %1054 = vst [vmem:[#allocation6 + $0x30] sm:$0xff] %v946
    %1055 = vst [vmem:[#allocation6 + $0x38] sm:$0xff] %v949
    %1056 = vst [vmem:[#allocation6 + $0x40] sm:$0xff] %v954
    %1057 = vst [vmem:[#allocation6 + $0x48] sm:$0xff] %v957
    %1058 = vst [vmem:[#allocation6 + $0x50] sm:$0xff] %v962
    %1059 = vst [vmem:[#allocation6 + $0x58] sm:$0xff] %v965
    %1060 = vst [vmem:[#allocation6 + $0x60] sm:$0xff] %v970
    %1061 = vst [vmem:[#allocation6 + $0x68] sm:$0xff] %v973
    %1062 = vst [vmem:[#allocation6 + $0x70] sm:$0xff] %v978
    %1063 = vst [vmem:[#allocation6 + $0x78] sm:$0xff] %v981
    %1064 = vst [vmem:[#allocation6 + $0x80] sm:$0xff] %v986
    %1065 = vst [vmem:[#allocation6 + $0x88] sm:$0xff] %v989
    %1066 = vst [vmem:[#allocation6 + $0x90] sm:$0xff] %v994
    %1067 = vst [vmem:[#allocation6 + $0x98] sm:$0xff] %v997
    %1068 = vst [vmem:[#allocation6 + $0xa0] sm:$0xff] %v1002
    %1069 = vst [vmem:[#allocation6 + $0xa8] sm:$0xff] %v1005
    %1070 = vst [vmem:[#allocation6 + $0xb0] sm:$0xff] %v1010
    %1071 = vst [vmem:[#allocation6 + $0xb8] sm:$0xff] %v1013
    %1072 = vst [vmem:[#allocation6 + $0xc0] sm:$0xff] %v1018
    %1073 = vst [vmem:[#allocation6 + $0xc8] sm:$0xff] %v1021
    %1074 = vst [vmem:[#allocation6 + $0xd0] sm:$0xff] %v1026
    %1075 = vst [vmem:[#allocation6 + $0xd8] sm:$0xff] %v1029
    %1076 = vst [vmem:[#allocation6 + $0xe0] sm:$0xff] %v1034
    %1077 = vst [vmem:[#allocation6 + $0xe8] sm:$0xff] %v1037
    %1078 = vst [vmem:[#allocation6 + $0xf0] sm:$0xff] %v1042
    %1079 = vst [vmem:[#allocation6 + $0xf8] sm:$0xff] %v1045
    // Predicated region
    $region26: #{tpu_custom_call.1} parent=1 // pred_check
      _
    $region27: #{tpu_custom_call.1} parent=1 // pred_check_branch
      %1081 = sbr.rel (0) target = $region29
    $region28: #{tpu_custom_call.1} parent=1 // pred_region
      %s1082 = sadd.s32 0, 0
      %s1083 = smul.u32 32, %s1082
      %s1085 = ssub.s32 4096, 4096
      %1086 = vsyncadd [#allocation5], %s1085
      %s1087 = smul.addr %s1083, 128
      %s1088 = scalar_lea.hbm %s4, %s1087
      %s1089 = sshll.u32 [#allocation6], 4
      %s1090 = int_to_ptr.vmem [resolvable:$true] %s1089
      %1095 = dma.vmem_to_hbm [thread:$0]  %s1090, 4096, %s1088, [#allocation5], 128, 128, 8
    $region29: #{tpu_custom_call.1} parent=1 // pred_fallthru
      _
    // Predicated region
    $region30: #{tpu_custom_call.1} parent=1 // pred_check
      _
    $region31: #{tpu_custom_call.1} parent=1 // pred_check_branch
      %1097 = sbr.rel (0) target = $region33
    $region32: #{tpu_custom_call.1} parent=1 // pred_region
      %1098 = dma.done [#allocation5], 4096
    $region33: #{tpu_custom_call.1} parent=1 // pred_fallthru
      _
    %1099 = vsyncpa [#allocation4], 1
    %1100 = vsyncpa [#allocation5], 1

</llo_original>
